<compile_context>
chip_gen: v6e
topology: v6e:2x2x1
jax: 0.10.0
libtpu: 0.0.40
codegen_flags: <defaults>
</compile_context>

<pallas_src>
import functools
import math

import jax
import jax.numpy as jnp
from jax.experimental import pallas as pl
from jax.experimental.pallas import tpu as pltpu


def _round_up(x, m):
    return ((x + m - 1) // m) * m


# ----------------------------------------------------------------------------
# Fused two-layer MLP kernel:  out = ELU(x @ W1 + b1) @ W2 + b2
# (covers planner AND scorer heads in one pass via packed / block-diag weights)
# ----------------------------------------------------------------------------
def _fused_mlp_kernel(x_ref, w1_ref, b1_ref, w2_ref, b2_ref, o_ref):
    # In-kernel cast of the activation to the weight (compute) dtype: one VPU
    # op hidden under the weight DMA, no extra HBM round-trip in the wrapper.
    x = x_ref[...].astype(w1_ref.dtype)
    # layer 1: MXU matmul with f32 accumulation + bias + ELU epilogue (f32).
    h = jnp.dot(x, w1_ref[...], preferred_element_type=jnp.float32) + b1_ref[...]
    # ELU(alpha=1): exp runs on the EUP slot; min() guards the unselected branch.
    h = jnp.where(h > 0.0, h, jnp.exp(jnp.minimum(h, 0.0)) - 1.0)
    # layer 2: matmul (operands in weight dtype, f32 acc) + bias; lane-dense
    # 128-padded output -> full-width unmasked store.
    h = h.astype(w2_ref.dtype)
    o_ref[...] = (
        jnp.dot(h, w2_ref[...], preferred_element_type=jnp.float32)
        + b2_ref[...]
    )


def fused_two_head_mlp(x, w1, b1, w2, b2, *, tile_m=1024):
    """x: (M, K) f32; w1: (K, H); b1: (1, H) f32; w2: (H, Npad); b2: (1, Npad) f32.

    K, H, Npad must be multiples of 128 (true here: 256 / 256 / 128).
    Weights may be f32 or bf16 (accumulation + epilogue stay f32).
    Returns (M, Npad) f32."""
    M, K = x.shape
    H = w1.shape[1]
    N = w2.shape[1]
    assert K % 128 == 0 and H % 128 == 0 and N % 128 == 0
    assert b1.shape == (1, H) and b2.shape == (1, N)

    # Full-extent M block when it fits in one tile (small-batch / latency
    # regime): no partial block, no masked stores, sublane-rule exempt.
    # Otherwise tile_m (multiple of 32) shards M across grid steps / cores.
    tm = M if M <= tile_m else tile_m
    grid = (pl.cdiv(M, tm),)

    itemsize = lambda a: a.size * a.dtype.itemsize
    cost = pl.CostEstimate(
        flops=2 * M * (K * H + H * N),
        transcendentals=M * H,
        bytes_accessed=(itemsize(x) + itemsize(w1) + itemsize(b1)
                        + itemsize(w2) + itemsize(b2) + M * N * 4),
    )

    return pl.pallas_call(
        _fused_mlp_kernel,
        out_shape=jax.ShapeDtypeStruct((M, N), jnp.float32),
        grid=grid,
        in_specs=[
            pl.BlockSpec((tm, K), lambda i: (i, 0)),
            pl.BlockSpec((K, H), lambda i: (0, 0)),
            pl.BlockSpec((1, H), lambda i: (0, 0)),
            pl.BlockSpec((H, N), lambda i: (0, 0)),
            pl.BlockSpec((1, N), lambda i: (0, 0)),
        ],
        out_specs=pl.BlockSpec((tm, N), lambda i: (i, 0)),
        compiler_params=pltpu.CompilerParams(
            dimension_semantics=("parallel",)),
        cost_estimate=cost,
    )(x, w1, b1, w2, b2)


# ----------------------------------------------------------------------------
# One-time weight packing: concat layer-1 heads, block-diagonal layer-2,
# pad the output width to a multiple of 128, cast to the storage dtype.
# Runs ONCE (outside the per-call path).
# ----------------------------------------------------------------------------
def pack_params(raw, timestep, out_step, *, weight_dtype=jnp.float32):
    hidden = raw["planner_w1"].shape[0]          # 128
    n_plan = timestep * out_step * 10
    n_out = n_plan + 1
    n_pad = _round_up(n_out, 128)

    # layer 1: (in_dim, 2*hidden)
    w1 = jnp.concatenate([raw["planner_w1"].T, raw["scorer_w1"].T], axis=1)
    b1 = jnp.concatenate([raw["planner_b1"], raw["scorer_b1"]]).reshape(1, -1)
    # layer 2: block-diagonal (2*hidden, n_pad), zero-padded lane-dense width
    w2 = jnp.zeros((2 * hidden, n_pad), jnp.float32)
    w2 = w2.at[:hidden, :n_plan].set(raw["planner_w2"].T)
    w2 = w2.at[hidden:, n_plan:n_out].set(raw["scorer_w2"].T)
    b2 = jnp.zeros((1, n_pad), jnp.float32)
    b2 = b2.at[0, :n_plan].set(raw["planner_b2"])
    b2 = b2.at[0, n_plan:n_out].set(raw["scorer_b2"])

    return {
        "w1": w1.astype(weight_dtype),   # bf16 on v6e/v7x halves weight DMA
        "b1": b1.astype(jnp.float32),    # biases stay f32 (f32 epilogue)
        "w2": w2.astype(weight_dtype),
        "b2": b2.astype(jnp.float32),
        "n_plan": n_plan,
    }


# ----------------------------------------------------------------------------
# Kinematic rollout (only used when use_dynamic=True) — plain JAX
# ----------------------------------------------------------------------------
def physical(action, last_state, d_t=0.1):
    d_v = jnp.clip(action[:, :, :, 0], -5.0, 5.0)
    d_theta = jnp.clip(action[:, :, :, 1], -1.0, 1.0)
    x_0 = last_state[:, 0]
    y_0 = last_state[:, 1]
    theta_0 = last_state[:, 4]
    v_0 = jnp.hypot(last_state[:, 2], last_state[:, 3])
    v = v_0.reshape(-1, 1, 1) + jnp.cumsum(d_v * d_t, axis=-1)
    v = jnp.maximum(v, 0.0)
    theta = theta_0.reshape(-1, 1, 1) + jnp.cumsum(d_theta * d_t, axis=-1)
    theta = jnp.fmod(theta, 2.0 * math.pi)
    x = x_0.reshape(-1, 1, 1) + jnp.cumsum(v * jnp.cos(theta) * d_t, axis=-1)
    y = y_0.reshape(-1, 1, 1) + jnp.cumsum(v * jnp.sin(theta) * d_t, axis=-1)
    return jnp.stack([x, y, theta], axis=-1)


# ----------------------------------------------------------------------------
# EgoPlanner forward (consumes ALREADY-PACKED params)
# ----------------------------------------------------------------------------
def ego_planner_forward(packed, features, current_state=None, *,
                        timestep=5, out_step=2, use_dynamic=False,
                        tile_m=1024):
    """features: (B, 9, 256) f32 -> (traj (B, 9, timestep*10, out_step), score (B, 9, 1))."""
    B, n_tok, in_dim = features.shape
    n_plan = timestep * out_step * 10

    x = features.reshape(B * n_tok, in_dim)
    out = fused_two_head_mlp(x, packed["w1"], packed["b1"],
                             packed["w2"], packed["b2"], tile_m=tile_m)

    traj = out[:, :n_plan].reshape(-1, 9, timestep * 10, out_step)
    score = out[:, n_plan:n_plan + 1].reshape(B, n_tok, 1)

    if use_dynamic:
        traj = physical(traj, current_state)
    return traj, score


# ----------------------------------------------------------------------------
# Deterministic parameter init (shapes follow the PyTorch __init__)
# ----------------------------------------------------------------------------
def init_params(key, timestep=5, out_step=2, in_dim=256, hidden=128):
    n_plan = timestep * out_step * 10
    ks = jax.random.split(key, 8)

    def u(k, shape, fan_in):
        bound = 1.0 / math.sqrt(fan_in)
        return jax.random.uniform(k, shape, jnp.float32, -bound, bound)

    return {
        "planner_w1": u(ks[0], (hidden, in_dim), in_dim),
        "planner_b1": u(ks[1], (hidden,), in_dim),
        "planner_w2": u(ks[2], (n_plan, hidden), hidden),
        "planner_b2": u(ks[3], (n_plan,), hidden),
        "scorer_w1": u(ks[4], (hidden, in_dim), in_dim),
        "scorer_b1": u(ks[5], (hidden,), in_dim),
        "scorer_w2": u(ks[6], (1, hidden), hidden),
        "scorer_b2": u(ks[7], (1,), hidden),
    }


# ----------------------------------------------------------------------------
if __name__ == "__main__":
    timestep, out_step = 5, 2
    B = 2

    key = jax.random.PRNGKey(0)
    kp, kf, ks = jax.random.split(key, 3)
    raw_params = init_params(kp, timestep=timestep, out_step=out_step)
    features = jax.random.normal(kf, (B, 9, 256), jnp.float32)
    current_state = jax.random.normal(ks, (B, 5), jnp.float32)

    # Pack ONCE (outside the jitted per-call path).  Use
    # weight_dtype=jnp.bfloat16 on v6e/v7x to halve the resident weight DMA.
    packed = jax.block_until_ready(
        pack_params(raw_params, timestep, out_step, weight_dtype=jnp.float32))

    fwd = jax.jit(functools.partial(
        ego_planner_forward,
        timestep=timestep, out_step=out_step,
        use_dynamic=False))                 # module default

    traj, score = fwd(packed, features, current_state)
    (traj, score) = jax.block_until_ready((traj, score))

    assert traj.shape == (B, 9, timestep * 10, out_step), traj.shape
    assert score.shape == (B, 9, 1), score.shape
    assert bool(jnp.all(jnp.isfinite(traj))) and bool(jnp.all(jnp.isfinite(score)))

    # Cross-check against a plain-JAX reference of the PyTorch module (eval mode).
    xf = features.reshape(-1, 256)
    h_p = xf @ raw_params["planner_w1"].T + raw_params["planner_b1"]
    h_p = jnp.where(h_p > 0, h_p, jnp.exp(jnp.minimum(h_p, 0.0)) - 1.0)
    ref_traj = (h_p @ raw_params["planner_w2"].T + raw_params["planner_b2"]
                ).reshape(-1, 9, timestep * 10, out_step)
    h_s = xf @ raw_params["scorer_w1"].T + raw_params["scorer_b1"]
    h_s = jnp.where(h_s > 0, h_s, jnp.exp(jnp.minimum(h_s, 0.0)) - 1.0)
    ref_score = (h_s @ raw_params["scorer_w2"].T + raw_params["scorer_b2"]
                 ).reshape(B, 9, 1)
    assert jnp.allclose(traj, ref_traj, atol=1e-4, rtol=1e-4)
    assert jnp.allclose(score, ref_score, atol=1e-4, rtol=1e-4)

    print("KERNEL_OK")
</pallas_src>

<mosaic_0001>
module attributes {stable_mosaic.version = 11 : i64} {
  func.func @_fused_mlp_kernel(%arg0: i32, %arg1: memref<18x256xf32, #tpu.memory_space<vmem>>, %arg2: memref<256x256xf32, #tpu.memory_space<vmem>>, %arg3: memref<1x256xf32, #tpu.memory_space<vmem>>, %arg4: memref<256x128xf32, #tpu.memory_space<vmem>>, %arg5: memref<1x128xf32, #tpu.memory_space<vmem>>, %arg6: memref<18x128xf32, #tpu.memory_space<vmem>>) attributes {dimension_semantics = [#tpu.dimension_semantics<parallel>], iteration_bounds = array<i64: 1>, scalar_prefetch = 0 : i64, scratch_operands = 0 : i64, tpu.core_type = #tpu.core_type<tc>, window_params = [{transform_indices = @transform_0, window_bounds = array<i64: 18, 256>}, {pipeline_mode = #tpu.pipeline_mode<synchronous>, transform_indices = @transform_1, window_bounds = array<i64: 256, 256>}, {pipeline_mode = #tpu.pipeline_mode<synchronous>, transform_indices = @transform_2, window_bounds = array<i64: 1, 256>}, {pipeline_mode = #tpu.pipeline_mode<synchronous>, transform_indices = @transform_3, window_bounds = array<i64: 256, 128>}, {pipeline_mode = #tpu.pipeline_mode<synchronous>, transform_indices = @transform_4, window_bounds = array<i64: 1, 128>}, {transform_indices = @transform_5, window_bounds = array<i64: 18, 128>}]} {
    %c0 = arith.constant 0 : index
    %c0_0 = arith.constant 0 : index
    %0 = vector.load %arg1[%c0, %c0_0] : memref<18x256xf32, #tpu.memory_space<vmem>>, vector<18x256xf32>
    %c0_1 = arith.constant 0 : index
    %c0_2 = arith.constant 0 : index
    %1 = vector.load %arg2[%c0_1, %c0_2] : memref<256x256xf32, #tpu.memory_space<vmem>>, vector<256x256xf32>
    %cst = arith.constant dense<0.000000e+00> : vector<18x256xf32>
    %2 = tpu.matmul %0, %1, %cst {dimension_numbers = #tpu.dot_dimension_numbers<[1], [0], [0], [1], [0, 0, 1, 1], [], []>} : vector<18x256xf32>, vector<256x256xf32>, vector<18x256xf32> -> vector<18x256xf32>
    %c0_3 = arith.constant 0 : index
    %c0_4 = arith.constant 0 : index
    %3 = vector.load %arg3[%c0_3, %c0_4] : memref<1x256xf32, #tpu.memory_space<vmem>>, vector<1x256xf32>
    %4 = vector.broadcast %3 : vector<1x256xf32> to vector<18x256xf32>
    %5 = arith.addf %2, %4 : vector<18x256xf32>
    %cst_5 = arith.constant 0.000000e+00 : f32
    %6 = vector.broadcast %cst_5 : f32 to vector<18x256xf32>
    %7 = arith.cmpf ogt, %5, %6 : vector<18x256xf32>
    %cst_6 = arith.constant 0.000000e+00 : f32
    %8 = vector.broadcast %cst_6 : f32 to vector<18x256xf32>
    %9 = arith.minimumf %5, %8 : vector<18x256xf32>
    %10 = math.exp %9 : vector<18x256xf32>
    %cst_7 = arith.constant 1.000000e+00 : f32
    %11 = vector.broadcast %cst_7 : f32 to vector<18x256xf32>
    %12 = arith.subf %10, %11 : vector<18x256xf32>
    %13 = arith.select %7, %5, %12 : vector<18x256xi1>, vector<18x256xf32>
    %c0_8 = arith.constant 0 : index
    %c0_9 = arith.constant 0 : index
    %14 = vector.load %arg4[%c0_8, %c0_9] : memref<256x128xf32, #tpu.memory_space<vmem>>, vector<256x128xf32>
    %cst_10 = arith.constant dense<0.000000e+00> : vector<18x128xf32>
    %15 = tpu.matmul %13, %14, %cst_10 {dimension_numbers = #tpu.dot_dimension_numbers<[1], [0], [0], [1], [0, 0, 1, 1], [], []>} : vector<18x256xf32>, vector<256x128xf32>, vector<18x128xf32> -> vector<18x128xf32>
    %c0_11 = arith.constant 0 : index
    %c0_12 = arith.constant 0 : index
    %16 = vector.load %arg5[%c0_11, %c0_12] : memref<1x128xf32, #tpu.memory_space<vmem>>, vector<1x128xf32>
    %17 = vector.broadcast %16 : vector<1x128xf32> to vector<18x128xf32>
    %18 = arith.addf %15, %17 : vector<18x128xf32>
    %c0_13 = arith.constant 0 : index
    %c0_14 = arith.constant 0 : index
    %19 = vector.load %arg6[%c0_13, %c0_14] : memref<18x128xf32, #tpu.memory_space<vmem>>, vector<18x128xf32>
    tpu.vector_store %arg6[%c0_13, %c0_14], %18 {strides = array<i32>} : memref<18x128xf32, #tpu.memory_space<vmem>>, vector<18x128xf32>,
    return
  }
  func.func @transform_0(%arg0: i32) -> (i32, i32) {
    %c0_i32 = arith.constant 0 : i32
    %c0_i32_0 = arith.constant 0 : i32
    return %arg0, %c0_i32 : i32, i32
  }
  func.func @transform_1(%arg0: i32) -> (i32, i32) {
    %c0_i32 = arith.constant 0 : i32
    %c0_i32_0 = arith.constant 0 : i32
    %c0_i32_1 = arith.constant 0 : i32
    return %c0_i32, %c0_i32_0 : i32, i32
  }
  func.func @transform_2(%arg0: i32) -> (i32, i32) {
    %c0_i32 = arith.constant 0 : i32
    %c0_i32_0 = arith.constant 0 : i32
    %c0_i32_1 = arith.constant 0 : i32
    return %c0_i32, %c0_i32_0 : i32, i32
  }
  func.func @transform_3(%arg0: i32) -> (i32, i32) {
    %c0_i32 = arith.constant 0 : i32
    %c0_i32_0 = arith.constant 0 : i32
    %c0_i32_1 = arith.constant 0 : i32
    return %c0_i32, %c0_i32_0 : i32, i32
  }
  func.func @transform_4(%arg0: i32) -> (i32, i32) {
    %c0_i32 = arith.constant 0 : i32
    %c0_i32_0 = arith.constant 0 : i32
    %c0_i32_1 = arith.constant 0 : i32
    return %c0_i32, %c0_i32_0 : i32, i32
  }
  func.func @transform_5(%arg0: i32) -> (i32, i32) {
    %c0_i32 = arith.constant 0 : i32
    %c0_i32_0 = arith.constant 0 : i32
    return %arg0, %c0_i32 : i32, i32
  }
}

</mosaic_0001>

<llo_original>
// kernel: ego_planner_forward.1
$region0: #{ego_planner_forward.1}
  #allocation0 [shape = 'u32[]', space=smem, size = 0x4, offset = 0x4, fixed_abs, tag = 'smem constant byte address 0x4 - core index']
  #allocation1 [shape = 'u32[144,128]{1,0:T(1,128)}', space=vmem, size = 0x12000, scoped, tag = 'internal scratch']
  %s0 = inlined_call_operand.vmem [shape: f32[18,256], index: 0, kind: input, shape index: {}]
  %s1 = inlined_call_operand.hbm [shape: f32[256,256], index: 1, kind: input, shape index: {}]
  %s2 = inlined_call_operand.vmem [shape: f32[1,256], index: 2, kind: input, shape index: {}]
  %s3 = inlined_call_operand.hbm [shape: f32[256,128], index: 3, kind: input, shape index: {}]
  %s4 = inlined_call_operand.vmem [shape: f32[1,128], index: 4, kind: input, shape index: {}]
  %s5 = inlined_call_operand.vmem [shape: f32[18,128], index: 5, kind: output, shape index: {}]
  %s6 = sld [smem:[#allocation0]]
  $region38: #{ego_planner_forward.1} parent=0
    _
  %s8 = ssub.s32 1, %s6
  %s9 = scalar_select 0, %s8, %s6
  $region1: #{ego_planner_forward.1} parent=0
    #allocation2 [shape = 'u8[262144]{0}', space=vmem, size = 0x40000, scoped, tag = 'input window, operand 1, single buffered']
    #allocation3 [shape = 's32[1]{0}', space=sflag, size = 0x4, scoped, tag = 'scoped memory for ego_planner_forward.1']
    #allocation4 [shape = 'u8[131072]{0}', space=vmem, size = 0x20000, scoped, tag = 'input window, operand 3, single buffered']
    #allocation5 [shape = 's32[1]{0}', space=sflag, size = 0x4, scoped, tag = 'scoped memory for ego_planner_forward.1']
    %10 = vsyncpa [#allocation3], 0
    %11 = vsyncpa [#allocation5], 0
    // Predicated region
    $region2: #{ego_planner_forward.1} parent=1 // pred_check
      _
    $region3: #{ego_planner_forward.1} parent=1 // pred_check_branch
      %13 = sbr.rel (0) target = $region5
    $region4: #{ego_planner_forward.1} parent=1 // pred_region
      _
    $region5: #{ego_planner_forward.1} parent=1 // pred_fallthru
      _
    // Predicated region
    $region6: #{ego_planner_forward.1} parent=1 // pred_check
      _
    $region7: #{ego_planner_forward.1} parent=1 // pred_check_branch
      %15 = sbr.rel (0) target = $region9
    $region8: #{ego_planner_forward.1} parent=1 // pred_region
      %s17 = ssub.s32 8192, 8192
      %18 = vsyncadd [#allocation3], %s17
      %s19 = sshll.u32 [#allocation2], 4
      %s20 = int_to_ptr.vmem [resolvable:$true] %s19
      %25 = dma.hbm_to_vmem [thread:$0]  %s1, 8192, %s20, [#allocation3], 256, 256, 16
    $region9: #{ego_planner_forward.1} parent=1 // pred_fallthru
      _
    // Predicated region
    $region10: #{ego_planner_forward.1} parent=1 // pred_check
      _
    $region11: #{ego_planner_forward.1} parent=1 // pred_check_branch
      %27 = sbr.rel (0) target = $region13
    $region12: #{ego_planner_forward.1} parent=1 // pred_region
      _
    $region13: #{ego_planner_forward.1} parent=1 // pred_fallthru
      _
    // Predicated region
    $region14: #{ego_planner_forward.1} parent=1 // pred_check
      _
    $region15: #{ego_planner_forward.1} parent=1 // pred_check_branch
      %29 = sbr.rel (0) target = $region17
    $region16: #{ego_planner_forward.1} parent=1 // pred_region
      %s31 = ssub.s32 4096, 4096
      %32 = vsyncadd [#allocation5], %s31
      %s33 = sshll.u32 [#allocation4], 4
      %s34 = int_to_ptr.vmem [resolvable:$true] %s33
      %39 = dma.hbm_to_vmem [thread:$0]  %s3, 4096, %s34, [#allocation5], 128, 128, 8
    $region17: #{ego_planner_forward.1} parent=1 // pred_fallthru
      _
    // Predicated region
    $region18: #{ego_planner_forward.1} parent=1 // pred_check
      _
    $region19: #{ego_planner_forward.1} parent=1 // pred_check_branch
      %41 = sbr.rel (0) target = $region21
    $region20: #{ego_planner_forward.1} parent=1 // pred_region
      _
    $region21: #{ego_planner_forward.1} parent=1 // pred_fallthru
      _
    // Predicated region
    $region22: #{ego_planner_forward.1} parent=1 // pred_check
      _
    $region23: #{ego_planner_forward.1} parent=1 // pred_check_branch
      %43 = sbr.rel (0) target = $region25
    $region24: #{ego_planner_forward.1} parent=1 // pred_region
      %44 = dma.done [#allocation3], 8192
    $region25: #{ego_planner_forward.1} parent=1 // pred_fallthru
      _
    // Predicated region
    $region26: #{ego_planner_forward.1} parent=1 // pred_check
      _
    $region27: #{ego_planner_forward.1} parent=1 // pred_check_branch
      %46 = sbr.rel (0) target = $region29
    $region28: #{ego_planner_forward.1} parent=1 // pred_region
      %47 = dma.done [#allocation5], 4096
    $region29: #{ego_planner_forward.1} parent=1 // pred_fallthru
      _
    %v48 = vld [vmem:[%s0] sm:$0xff]
    %v49 = vld [vmem:[%s0 + $0x8] sm:$0xff]
    %v50 = vld [vmem:[%s0 + $0x10] sm:$0xff]
    %v51 = vld [vmem:[%s0 + $0x18] sm:$0xff]
    %v52 = vld [vmem:[%s0 + $0x20] sm:$0x3]
    %v53 = vld [vmem:[%s0 + $0x28] sm:$0x3]
    %v54 = vld [vmem:[#allocation2] sm:$0xff]
    %v55 = vld [vmem:[#allocation2 + $0x8] sm:$0xff]
    %v56 = vld [vmem:[#allocation2 + $0x10] sm:$0xff]
    %v57 = vld [vmem:[#allocation2 + $0x18] sm:$0xff]
    %v58 = vld [vmem:[#allocation2 + $0x20] sm:$0xff]
    %v59 = vld [vmem:[#allocation2 + $0x28] sm:$0xff]
    %v60 = vld [vmem:[#allocation2 + $0x30] sm:$0xff]
    %v61 = vld [vmem:[#allocation2 + $0x38] sm:$0xff]
    %v62 = vld [vmem:[#allocation2 + $0x40] sm:$0xff]
    %v63 = vld [vmem:[#allocation2 + $0x48] sm:$0xff]
    %v64 = vld [vmem:[#allocation2 + $0x50] sm:$0xff]
    %v65 = vld [vmem:[#allocation2 + $0x58] sm:$0xff]
    %v66 = vld [vmem:[#allocation2 + $0x60] sm:$0xff]
    %v67 = vld [vmem:[#allocation2 + $0x68] sm:$0xff]
    %v68 = vld [vmem:[#allocation2 + $0x70] sm:$0xff]
    %v69 = vld [vmem:[#allocation2 + $0x78] sm:$0xff]
    %v70 = vld [vmem:[#allocation2 + $0x80] sm:$0xff]
    %v71 = vld [vmem:[#allocation2 + $0x88] sm:$0xff]
    %v72 = vld [vmem:[#allocation2 + $0x90] sm:$0xff]
    %v73 = vld [vmem:[#allocation2 + $0x98] sm:$0xff]
    %v74 = vld [vmem:[#allocation2 + $0xa0] sm:$0xff]
    %v75 = vld [vmem:[#allocation2 + $0xa8] sm:$0xff]
    %v76 = vld [vmem:[#allocation2 + $0xb0] sm:$0xff]
    %v77 = vld [vmem:[#allocation2 + $0xb8] sm:$0xff]
    %v78 = vld [vmem:[#allocation2 + $0xc0] sm:$0xff]
    %v79 = vld [vmem:[#allocation2 + $0xc8] sm:$0xff]
    %v80 = vld [vmem:[#allocation2 + $0xd0] sm:$0xff]
    %v81 = vld [vmem:[#allocation2 + $0xd8] sm:$0xff]
    %v82 = vld [vmem:[#allocation2 + $0xe0] sm:$0xff]
    %v83 = vld [vmem:[#allocation2 + $0xe8] sm:$0xff]
    %v84 = vld [vmem:[#allocation2 + $0xf0] sm:$0xff]
    %v85 = vld [vmem:[#allocation2 + $0xf8] sm:$0xff]
    %v86 = vld [vmem:[#allocation2 + $0x100] sm:$0xff]
    %v87 = vld [vmem:[#allocation2 + $0x108] sm:$0xff]
    %v88 = vld [vmem:[#allocation2 + $0x110] sm:$0xff]
    %v89 = vld [vmem:[#allocation2 + $0x118] sm:$0xff]
    %v90 = vld [vmem:[#allocation2 + $0x120] sm:$0xff]
    %v91 = vld [vmem:[#allocation2 + $0x128] sm:$0xff]
    %v92 = vld [vmem:[#allocation2 + $0x130] sm:$0xff]
    %v93 = vld [vmem:[#allocation2 + $0x138] sm:$0xff]
    %v94 = vld [vmem:[#allocation2 + $0x140] sm:$0xff]
    %v95 = vld [vmem:[#allocation2 + $0x148] sm:$0xff]
    %v96 = vld [vmem:[#allocation2 + $0x150] sm:$0xff]
    %v97 = vld [vmem:[#allocation2 + $0x158] sm:$0xff]
    %v98 = vld [vmem:[#allocation2 + $0x160] sm:$0xff]
    %v99 = vld [vmem:[#allocation2 + $0x168] sm:$0xff]
    %v100 = vld [vmem:[#allocation2 + $0x170] sm:$0xff]
    %v101 = vld [vmem:[#allocation2 + $0x178] sm:$0xff]
    %v102 = vld [vmem:[#allocation2 + $0x180] sm:$0xff]
    %v103 = vld [vmem:[#allocation2 + $0x188] sm:$0xff]
    %v104 = vld [vmem:[#allocation2 + $0x190] sm:$0xff]
    %v105 = vld [vmem:[#allocation2 + $0x198] sm:$0xff]
    %v106 = vld [vmem:[#allocation2 + $0x1a0] sm:$0xff]
    %v107 = vld [vmem:[#allocation2 + $0x1a8] sm:$0xff]
    %v108 = vld [vmem:[#allocation2 + $0x1b0] sm:$0xff]
    %v109 = vld [vmem:[#allocation2 + $0x1b8] sm:$0xff]
    %v110 = vld [vmem:[#allocation2 + $0x1c0] sm:$0xff]
    %v111 = vld [vmem:[#allocation2 + $0x1c8] sm:$0xff]
    %v112 = vld [vmem:[#allocation2 + $0x1d0] sm:$0xff]
    %v113 = vld [vmem:[#allocation2 + $0x1d8] sm:$0xff]
    %v114 = vld [vmem:[#allocation2 + $0x1e0] sm:$0xff]
    %v115 = vld [vmem:[#allocation2 + $0x1e8] sm:$0xff]
    %v116 = vld [vmem:[#allocation2 + $0x1f0] sm:$0xff]
    %v117 = vld [vmem:[#allocation2 + $0x1f8] sm:$0xff]
    %v118 = vld [vmem:[%s2] sm:$0x3]
    %v120 = vlaneseq
    %v121 = vshrl.u32 %v120, 7
    %v122 = vsub.s32 0, %v121
    %v123 = vrot.slane %v118, %v122
    %v124 = vlaneseq
    %v125 = vshrl.u32 %v124, 7
    %v126 = vsub.s32 1, %v125
    %v127 = vrot.slane %v118, %v126
    %130 = vmatprep.subr.mxu0 %v85
    %131 = vmatpush1.msra.mxu0 %v84
    %132 = vmatprep.subr.mxu0 %v83
    %133 = vmatpush1.msra.mxu0 %v82
    %134 = vmatprep.subr.mxu0 %v81
    %135 = vmatpush1.msra.mxu0 %v80
    %136 = vmatprep.subr.mxu0 %v79
    %137 = vmatpush1.msra.mxu0 %v78
    %138 = vmatprep.subr.mxu0 %v77
    %139 = vmatpush1.msra.mxu0 %v76
    %140 = vmatprep.subr.mxu0 %v75
    %141 = vmatpush1.msra.mxu0 %v74
    %142 = vmatprep.subr.mxu0 %v73
    %143 = vmatpush1.msra.mxu0 %v72
    %144 = vmatprep.subr.mxu0 %v71
    %145 = vmatpush1.msra.mxu0 %v70
    %146 = vmatprep.subr.mxu0 %v69
    %147 = vmatpush1.msra.mxu0 %v68
    %148 = vmatprep.subr.mxu0 %v67
    %149 = vmatpush1.msra.mxu0 %v66
    %150 = vmatprep.subr.mxu0 %v65
    %151 = vmatpush1.msra.mxu0 %v64
    %152 = vmatprep.subr.mxu0 %v63
    %153 = vmatpush1.msra.mxu0 %v62
    %154 = vmatprep.subr.mxu0 %v61
    %155 = vmatpush1.msra.mxu0 %v60
    %156 = vmatprep.subr.mxu0 %v59
    %157 = vmatpush1.msra.mxu0 %v58
    %158 = vmatprep.subr.mxu0 %v57
    %159 = vmatpush1.msra.mxu0 %v56
    %160 = vmatprep.subr.mxu0 %v55
    %161 = vmatpush1.msra.mxu0 %v54
    %162 = vmatprep.subr.mxu0 %v117
    %163 = vmatpush2.msra.mxu0 %v116
    %164 = vmatprep.subr.mxu0 %v115
    %165 = vmatpush2.msra.mxu0 %v114
    %166 = vmatprep.subr.mxu0 %v113
    %167 = vmatpush2.msra.mxu0 %v112
    %168 = vmatprep.subr.mxu0 %v111
    %169 = vmatpush2.msra.mxu0 %v110
    %170 = vmatprep.subr.mxu0 %v109
    %171 = vmatpush2.msra.mxu0 %v108
    %172 = vmatprep.subr.mxu0 %v107
    %173 = vmatpush2.msra.mxu0 %v106
    %174 = vmatprep.subr.mxu0 %v105
    %175 = vmatpush2.msra.mxu0 %v104
    %176 = vmatprep.subr.mxu0 %v103
    %177 = vmatpush2.msra.mxu0 %v102
    %178 = vmatprep.subr.mxu0 %v101
    %179 = vmatpush2.msra.mxu0 %v100
    %180 = vmatprep.subr.mxu0 %v99
    %181 = vmatpush2.msra.mxu0 %v98
    %182 = vmatprep.subr.mxu0 %v97
    %183 = vmatpush2.msra.mxu0 %v96
    %184 = vmatprep.subr.mxu0 %v95
    %185 = vmatpush2.msra.mxu0 %v94
    %186 = vmatprep.subr.mxu0 %v93
    %187 = vmatpush2.msra.mxu0 %v92
    %188 = vmatprep.subr.mxu0 %v91
    %189 = vmatpush2.msra.mxu0 %v90
    %190 = vmatprep.subr.mxu0 %v89
    %191 = vmatpush2.msra.mxu0 %v88
    %192 = vmatprep.subr.mxu0 %v87
    %193 = vmatpush2.msra.mxu0 %v86
    %194 = vmatprep.mubr.f32.mxu0 %v49
    %195 = vmatmul.mubr.f32.gmra.mxu0 %v48
    %v196 = vpop.f32.mrf.mxu0
    %v197 = vadd.f32 %v123, %v196
    %v198 = vpop.f32.mrf.mxu0
    %v199 = vadd.f32 %v127, %v198
    %200 = vmatprep.mubr.f32.mxu0 %v51
    %201 = vmatmul.mubr.f32.gmra.mxu0 %v50
    %v202 = vpop.f32.mrf.mxu0
    %v203 = vadd.f32 %v123, %v202
    %v204 = vpop.f32.mrf.mxu0
    %v205 = vadd.f32 %v127, %v204
    %206 = vmatprep.mubr.f32.mxu0 %v53
    %207 = vmatmul.mubr.f32.gmra.mxu0 %v52
    %v208 = vpop.f32.mrf.mxu0
    %v209 = vadd.f32 %v123, %v208
    %v210 = vpop.f32.mrf.mxu0
    %v211 = vadd.f32 %v127, %v210
    %212 = vdwg.mxu0
    %vm213 = vcmp.gt.f32.partialorder %v197, 0.0
    %vm214 = vcmp.gt.f32.partialorder %v199, 0.0
    %vm215 = vcmp.gt.f32.partialorder %v203, 0.0
    %vm216 = vcmp.gt.f32.partialorder %v205, 0.0
    %vm217 = vcmp.gt.f32.partialorder %v209, 0.0
    %vm218 = vcmp.gt.f32.partialorder %v211, 0.0
    %v219 = vmin.f32 %v197, 0.0
    %v220 = vmin.f32 %v199, 0.0
    %v221 = vmin.f32 %v203, 0.0
    %v222 = vmin.f32 %v205, 0.0
    %v223 = vmin.f32 %v209, 0.0
    %v224 = vmin.f32 %v211, 0.0
    %v225 = vmul.f32 %v219, 1.442695
    %v226 = vpow.pop %v225
    %v227 = vmul.f32 %v220, 1.442695
    %v228 = vpow.pop %v227
    %v229 = vmul.f32 %v221, 1.442695
    %v230 = vpow.pop %v229
    %v231 = vmul.f32 %v222, 1.442695
    %v232 = vpow.pop %v231
    %v233 = vmul.f32 %v223, 1.442695
    %v234 = vpow.pop %v233
    %v235 = vmul.f32 %v224, 1.442695
    %v236 = vpow.pop %v235
    %v237 = vsub.f32 %v226, 1.0
    %v238 = vsub.f32 %v228, 1.0
    %v239 = vsub.f32 %v230, 1.0
    %v240 = vsub.f32 %v232, 1.0
    %v241 = vsub.f32 %v234, 1.0
    %v242 = vsub.f32 %v236, 1.0
    %v243 = vsel %vm213, %v197, %v237
    %v244 = vsel %vm214, %v199, %v238
    %v245 = vsel %vm215, %v203, %v239
    %v246 = vsel %vm216, %v205, %v240
    %v247 = vsel %vm217, %v209, %v241
    %v248 = vsel %vm218, %v211, %v242
    %v249 = vld [vmem:[#allocation4] sm:$0xff]
    %v250 = vld [vmem:[#allocation4 + $0x8] sm:$0xff]
    %v251 = vld [vmem:[#allocation4 + $0x10] sm:$0xff]
    %v252 = vld [vmem:[#allocation4 + $0x18] sm:$0xff]
    %v253 = vld [vmem:[#allocation4 + $0x20] sm:$0xff]
    %v254 = vld [vmem:[#allocation4 + $0x28] sm:$0xff]
    %v255 = vld [vmem:[#allocation4 + $0x30] sm:$0xff]
    %v256 = vld [vmem:[#allocation4 + $0x38] sm:$0xff]
    %v257 = vld [vmem:[#allocation4 + $0x40] sm:$0xff]
    %v258 = vld [vmem:[#allocation4 + $0x48] sm:$0xff]
    %v259 = vld [vmem:[#allocation4 + $0x50] sm:$0xff]
    %v260 = vld [vmem:[#allocation4 + $0x58] sm:$0xff]
    %v261 = vld [vmem:[#allocation4 + $0x60] sm:$0xff]
    %v262 = vld [vmem:[#allocation4 + $0x68] sm:$0xff]
    %v263 = vld [vmem:[#allocation4 + $0x70] sm:$0xff]
    %v264 = vld [vmem:[#allocation4 + $0x78] sm:$0xff]
    %v265 = vld [vmem:[#allocation4 + $0x80] sm:$0xff]
    %v266 = vld [vmem:[#allocation4 + $0x88] sm:$0xff]
    %v267 = vld [vmem:[#allocation4 + $0x90] sm:$0xff]
    %v268 = vld [vmem:[#allocation4 + $0x98] sm:$0xff]
    %v269 = vld [vmem:[#allocation4 + $0xa0] sm:$0xff]
    %v270 = vld [vmem:[#allocation4 + $0xa8] sm:$0xff]
    %v271 = vld [vmem:[#allocation4 + $0xb0] sm:$0xff]
    %v272 = vld [vmem:[#allocation4 + $0xb8] sm:$0xff]
    %v273 = vld [vmem:[#allocation4 + $0xc0] sm:$0xff]
    %v274 = vld [vmem:[#allocation4 + $0xc8] sm:$0xff]
    %v275 = vld [vmem:[#allocation4 + $0xd0] sm:$0xff]
    %v276 = vld [vmem:[#allocation4 + $0xd8] sm:$0xff]
    %v277 = vld [vmem:[#allocation4 + $0xe0] sm:$0xff]
    %v278 = vld [vmem:[#allocation4 + $0xe8] sm:$0xff]
    %v279 = vld [vmem:[#allocation4 + $0xf0] sm:$0xff]
    %v280 = vld [vmem:[#allocation4 + $0xf8] sm:$0xff]
    %v281 = vld [vmem:[%s4] sm:$0x1]
    %v283 = vlaneseq
    %v284 = vshrl.u32 %v283, 7
    %v285 = vsub.s32 0, %v284
    %v286 = vrot.slane %v281, %v285
    %288 = vmatprep.subr.mxu0 0.0
    %289 = vmatpush1.msra.mxu0 %v264
    %290 = vmatprep.subr.mxu0 0.0
    %291 = vmatpush1.msra.mxu0 %v263
    %292 = vmatprep.subr.mxu0 0.0
    %293 = vmatpush1.msra.mxu0 %v262
    %294 = vmatprep.subr.mxu0 0.0
    %295 = vmatpush1.msra.mxu0 %v261
    %296 = vmatprep.subr.mxu0 0.0
    %297 = vmatpush1.msra.mxu0 %v260
    %298 = vmatprep.subr.mxu0 0.0
    %299 = vmatpush1.msra.mxu0 %v259
    %300 = vmatprep.subr.mxu0 0.0
    %301 = vmatpush1.msra.mxu0 %v258
    %302 = vmatprep.subr.mxu0 0.0
    %303 = vmatpush1.msra.mxu0 %v257
    %304 = vmatprep.subr.mxu0 0.0
    %305 = vmatpush1.msra.mxu0 %v256
    %306 = vmatprep.subr.mxu0 0.0
    %307 = vmatpush1.msra.mxu0 %v255
    %308 = vmatprep.subr.mxu0 0.0
    %309 = vmatpush1.msra.mxu0 %v254
    %310 = vmatprep.subr.mxu0 0.0
    %311 = vmatpush1.msra.mxu0 %v253
    %312 = vmatprep.subr.mxu0 0.0
    %313 = vmatpush1.msra.mxu0 %v252
    %314 = vmatprep.subr.mxu0 0.0
    %315 = vmatpush1.msra.mxu0 %v251
    %316 = vmatprep.subr.mxu0 0.0
    %317 = vmatpush1.msra.mxu0 %v250
    %318 = vmatprep.subr.mxu0 0.0
    %319 = vmatpush1.msra.mxu0 %v249
    %320 = vmatprep.subr.mxu0 0.0
    %321 = vmatpush2.msra.mxu0 %v280
    %322 = vmatprep.subr.mxu0 0.0
    %323 = vmatpush2.msra.mxu0 %v279
    %324 = vmatprep.subr.mxu0 0.0
    %325 = vmatpush2.msra.mxu0 %v278
    %326 = vmatprep.subr.mxu0 0.0
    %327 = vmatpush2.msra.mxu0 %v277
    %328 = vmatprep.subr.mxu0 0.0
    %329 = vmatpush2.msra.mxu0 %v276
    %330 = vmatprep.subr.mxu0 0.0
    %331 = vmatpush2.msra.mxu0 %v275
    %332 = vmatprep.subr.mxu0 0.0
    %333 = vmatpush2.msra.mxu0 %v274
    %334 = vmatprep.subr.mxu0 0.0
    %335 = vmatpush2.msra.mxu0 %v273
    %336 = vmatprep.subr.mxu0 0.0
    %337 = vmatpush2.msra.mxu0 %v272
    %338 = vmatprep.subr.mxu0 0.0
    %339 = vmatpush2.msra.mxu0 %v271
    %340 = vmatprep.subr.mxu0 0.0
    %341 = vmatpush2.msra.mxu0 %v270
    %342 = vmatprep.subr.mxu0 0.0
    %343 = vmatpush2.msra.mxu0 %v269
    %344 = vmatprep.subr.mxu0 0.0
    %345 = vmatpush2.msra.mxu0 %v268
    %346 = vmatprep.subr.mxu0 0.0
    %347 = vmatpush2.msra.mxu0 %v267
    %348 = vmatprep.subr.mxu0 0.0
    %349 = vmatpush2.msra.mxu0 %v266
    %350 = vmatprep.subr.mxu0 0.0
    %351 = vmatpush2.msra.mxu0 %v265
    %352 = vmatprep.mubr.f32.mxu0 %v244
    %353 = vmatmul.mubr.f32.gmra.mxu0 %v243
    %v354 = vpop.f32.mrf.mxu0
    %v355 = vadd.f32 %v286, %v354
    %v356 = vpop.f32.mrf.mxu0
    %357 = vmatprep.mubr.f32.mxu0 %v246
    %358 = vmatmul.mubr.f32.gmra.mxu0 %v245
    %v359 = vpop.f32.mrf.mxu0
    %v360 = vadd.f32 %v286, %v359
    %v361 = vpop.f32.mrf.mxu0
    %362 = vmatprep.mubr.f32.mxu0 %v248
    %363 = vmatmul.mubr.f32.gmra.mxu0 %v247
    %v364 = vpop.f32.mrf.mxu0
    %v365 = vadd.f32 %v286, %v364
    %v366 = vpop.f32.mrf.mxu0
    %367 = vdwg.mxu0
    %368 = vst [vmem:[%s5] sm:$0xff] %v355
    %369 = vst [vmem:[%s5 + $0x8] sm:$0xff] %v360
    %370 = vst [vmem:[%s5 + $0x10] sm:$0x3] %v365
    // Predicated region
    $region30: #{ego_planner_forward.1} parent=1 // pred_check
      _
    $region31: #{ego_planner_forward.1} parent=1 // pred_check_branch
      %372 = sbr.rel (0) target = $region33
    $region32: #{ego_planner_forward.1} parent=1 // pred_region
      _
    $region33: #{ego_planner_forward.1} parent=1 // pred_fallthru
      _
    // Predicated region
    $region34: #{ego_planner_forward.1} parent=1 // pred_check
      _
    $region35: #{ego_planner_forward.1} parent=1 // pred_check_branch
      %374 = sbr.rel (0) target = $region37
    $region36: #{ego_planner_forward.1} parent=1 // pred_region
      _
    $region37: #{ego_planner_forward.1} parent=1 // pred_fallthru
      _
    %375 = vsyncpa [#allocation3], 1
    %376 = vsyncpa [#allocation5], 1

</llo_original>
